<compile_context>
chip_gen: v7x
topology: tpu7x:2x2x1
jax: 0.10.0
libtpu: 0.0.40
codegen_flags: <defaults>
</compile_context>

<pallas_src>
import jax
import jax.numpy as jnp
from jax.experimental import pallas as pl
from jax.experimental.pallas import tpu as pltpu


def _round_up(a, b):
    return (a + b - 1) // b * b


def _tensorcores_per_device():
    """Best-effort TensorCores-per-device count (v7x/v5p/v4 = 2, v5e/v6e = 1)."""
    try:
        dev = jax.devices()[0]
        nc = getattr(dev, "num_cores", None)
        if isinstance(nc, int) and nc > 0:
            return nc
        kind = str(getattr(dev, "device_kind", "")).lower()
        if any(tag in kind for tag in ("v7", "7x", "v5p", "v4", "v3")):
            return 2
    except Exception:
        pass
    return 1


def _vmem_capacity_bytes():
    """Physical VMEM per core, with a conservative fallback (v7x = 64 MiB)."""
    try:
        info = pltpu.get_tpu_info()
        cap = getattr(info, "vmem_capacity_bytes", None)
        if cap:
            return int(cap)
    except Exception:
        pass
    return 64 * 1024 * 1024


def _eq_kernel_body(x_ref, yT_ref, sxs_ref, sys_ref, o_ref):
    # x_ref:   (tn, D)   f32, pre-scaled by 2/scale in the wrapper
    # yT_ref:  (D, tm)   f32  (y pre-transposed; lane-dense along M)
    # sxs_ref: (tn, 1)   f32  = ||x||^2 / scale
    # sys_ref: (1, tm)   f32  = ||y||^2 / scale
    # o_ref:   (tn, tm)  out_dtype
    dot = jnp.dot(x_ref[...], yT_ref[...], preferred_element_type=jnp.float32)
    # exp(-(||x||^2 + ||y||^2 - 2 x.y) / scale)
    o_ref[...] = jnp.exp(dot - sxs_ref[...] - sys_ref[...]).astype(o_ref.dtype)


def eq_kernel_forward(x, y, scale=1.0, fixed_scale=True, *,
                      tn=1024, tm=2048, out_dtype=jnp.float32,
                      vmem_limit_bytes=64 * 1024 * 1024):
    """Pallas implementation of EQKernel.forward.

    x: (N, D) float32, y: (M, D) float32  ->  (N, M) out_dtype
    (bf16 out_dtype halves HBM writeback on this writeback-bound kernel.)
    """
    x = jnp.asarray(x, jnp.float32)
    y = jnp.asarray(y, jnp.float32)
    N, D = x.shape
    M, Dy = y.shape
    assert D == Dy, "feature dims must match"

    scale_val = jnp.asarray(scale, jnp.float32).reshape(())
    if not fixed_scale:
        # torch.clamp(F.softplus(scale), 1e-10, 1e4)
        scale_val = jnp.clip(jax.nn.softplus(scale_val), 1e-10, 10000.0)
    inv_scale = 1.0 / scale_val

    # Hoisted (pre-scaled) squared norms, pre-scaled LHS and transposed RHS:
    # cheap (N*D / M*D)-sized XLA glue computed once instead of per output tile.
    sxs = jnp.sum(x * x, axis=-1, keepdims=True) * inv_scale        # (N, 1)
    sys = (jnp.sum(y * y, axis=-1) * inv_scale)[None, :]            # (1, M)
    xs = x * (2.0 * inv_scale)                                      # (N, D)
    yT = y.T                                                        # (D, M)

    # ---- tile selection -----------------------------------------------------
    out_isz = jnp.dtype(out_dtype).itemsize
    tn_gran = 16 if out_isz < 4 else 8     # (16,128) min tile for sub-32-bit out
    tm_gran = 128

    tn = min(tn, _round_up(N, tn_gran))
    tm = min(tm, _round_up(M, tm_gran))

    # VMEM budget (v7x-aware): double-buffered input+output tiles with headroom.
    cap = _vmem_capacity_bytes()
    vmem_limit = int(min(int(vmem_limit_bytes), (cap * 7) // 8))
    tile_budget = (vmem_limit * 3) // 4

    def tiles_bytes(tn_, tm_):
        in_b = (tn_ * D + D * tm_ + tn_ + tm_) * 4
        out_b = tn_ * tm_ * out_isz
        return 2 * (in_b + out_b)          # double-buffered pipeline

    while tiles_bytes(tn, tm) > tile_budget:
        if tn >= tm and tn > tn_gran:
            tn = max(tn_gran, _round_up(tn // 2, tn_gran))
        elif tm > tm_gran:
            tm = max(tm_gran, _round_up(tm // 2, tm_gran))
        else:
            break

    # Multi-TensorCore (v7x) only: keep the number of parallel blocks a multiple
    # of the core count so neither TC idles.  No-op on single-TC v5e/v6e.
    n_tc = _tensorcores_per_device()
    if n_tc > 1:
        while ((pl.cdiv(N, tn) * pl.cdiv(M, tm)) % n_tc != 0
               and tn >= 2 * tn_gran):
            tn = max(tn_gran, _round_up(tn // 2, tn_gran))

    # i outer / j inner: x tile stays resident across the inner sweep over M.
    grid = (pl.cdiv(N, tn), pl.cdiv(M, tm))

    out = pl.pallas_call(
        _eq_kernel_body,
        out_shape=jax.ShapeDtypeStruct((N, M), out_dtype),
        grid_spec=pltpu.PrefetchScalarGridSpec(
            num_scalar_prefetch=0,
            grid=grid,
            in_specs=[
                pl.BlockSpec((tn, D), lambda i, j: (i, 0)),   # x * 2/scale
                pl.BlockSpec((D, tm), lambda i, j: (0, j)),   # y^T
                pl.BlockSpec((tn, 1), lambda i, j: (i, 0)),   # ||x||^2/scale
                pl.BlockSpec((1, tm), lambda i, j: (0, j)),   # ||y||^2/scale
            ],
            out_specs=pl.BlockSpec((tn, tm), lambda i, j: (i, j)),
        ),
        compiler_params=pltpu.CompilerParams(
            dimension_semantics=("parallel", "parallel"),
            vmem_limit_bytes=vmem_limit,
        ),
    )(xs, yT, sxs, sys)
    return out


def eq_kernel_reference(x, y, scale=1.0, fixed_scale=True):
    """Plain-JAX reference mirroring the PyTorch forward."""
    s = jnp.asarray([scale], dtype=jnp.float32)
    if not fixed_scale:
        s = jnp.clip(jax.nn.softplus(s), 1e-10, 10000.0)
    sq_x = jnp.sum(x ** 2, axis=-1, keepdims=True)
    sq_y = jnp.sum(y ** 2, axis=-1, keepdims=True).T
    d = sq_x + sq_y - 2.0 * (x @ y.T)
    return jnp.exp(-d / s)


if __name__ == "__main__":
    key = jax.random.PRNGKey(0)
    kx, ky = jax.random.split(key)

    # Small shapes: N=256 points vs M=128 inducing points, D=32 features.
    N, M, D = 256, 128, 32
    x = jax.random.normal(kx, (N, D), dtype=jnp.float32)
    y = jax.random.normal(ky, (M, D), dtype=jnp.float32)

    # fixed-scale path (EQKernel defaults: scale=1.0, fixed_scale=True)
    out = jax.block_until_ready(eq_kernel_forward(x, y, scale=1.0,
                                                  fixed_scale=True))
    ref = eq_kernel_reference(x, y, scale=1.0, fixed_scale=True)
    assert out.shape == (N, M)
    assert jnp.allclose(out, ref, atol=2e-5, rtol=1e-4), "mismatch (fixed scale)"

    # learnable-scale path (softplus + clamp glue)
    out2 = jax.block_until_ready(eq_kernel_forward(x, y, scale=0.5,
                                                   fixed_scale=False))
    ref2 = eq_kernel_reference(x, y, scale=0.5, fixed_scale=False)
    assert jnp.allclose(out2, ref2, atol=2e-5, rtol=1e-4), "mismatch (learned scale)"

    # ragged shapes: exercises the partial-last-block path (no pad / no slice)
    out3 = jax.block_until_ready(eq_kernel_forward(x[:200], y[:100]))
    ref3 = eq_kernel_reference(x[:200], y[:100])
    assert out3.shape == (200, 100)
    assert jnp.allclose(out3, ref3, atol=2e-5, rtol=1e-4), "mismatch (ragged)"

    # bf16 writeback path (recommended when downstream tolerates it)
    out4 = jax.block_until_ready(eq_kernel_forward(x, y,
                                                   out_dtype=jnp.bfloat16))
    assert out4.dtype == jnp.bfloat16
    assert jnp.allclose(out4.astype(jnp.float32), ref,
                        atol=2e-2, rtol=2e-2), "mismatch (bf16 out)"

    # TODO(synk): forward_diag (elementwise diagonal kernel) is trivially
    # mem-bound; left to plain JAX rather than a dedicated Pallas kernel.

    print("KERNEL_OK")
</pallas_src>

<mosaic_0001>
module attributes {stable_mosaic.version = 11 : i64} {
  func.func @_eq_kernel_body(%arg0: i32, %arg1: i32, %arg2: memref<256x32xf32, #tpu.memory_space<vmem>>, %arg3: memref<32x128xf32, #tpu.memory_space<vmem>>, %arg4: memref<256x1xf32, #tpu.memory_space<vmem>>, %arg5: memref<1x128xf32, #tpu.memory_space<vmem>>, %arg6: memref<256x128xf32, #tpu.memory_space<vmem>>) attributes {dimension_semantics = [#tpu.dimension_semantics<parallel>, #tpu.dimension_semantics<parallel>], iteration_bounds = array<i64: 1, 1>, scalar_prefetch = 0 : i64, scratch_operands = 0 : i64, tpu.core_type = #tpu.core_type<tc>, window_params = [{transform_indices = @transform_0, window_bounds = array<i64: 256, 32>}, {transform_indices = @transform_1, window_bounds = array<i64: 32, 128>}, {transform_indices = @transform_2, window_bounds = array<i64: 256, 1>}, {transform_indices = @transform_3, window_bounds = array<i64: 1, 128>}, {transform_indices = @transform_4, window_bounds = array<i64: 256, 128>}]} {
    %c0 = arith.constant 0 : index
    %c0_0 = arith.constant 0 : index
    %0 = vector.load %arg2[%c0, %c0_0] : memref<256x32xf32, #tpu.memory_space<vmem>>, vector<256x32xf32>
    %c0_1 = arith.constant 0 : index
    %c0_2 = arith.constant 0 : index
    %1 = vector.load %arg3[%c0_1, %c0_2] : memref<32x128xf32, #tpu.memory_space<vmem>>, vector<32x128xf32>
    %cst = arith.constant dense<0.000000e+00> : vector<256x128xf32>
    %2 = tpu.matmul %0, %1, %cst {dimension_numbers = #tpu.dot_dimension_numbers<[1], [0], [0], [1], [0, 0, 1, 1], [], []>} : vector<256x32xf32>, vector<32x128xf32>, vector<256x128xf32> -> vector<256x128xf32>
    %c0_3 = arith.constant 0 : index
    %c0_4 = arith.constant 0 : index
    %3 = vector.load %arg4[%c0_3, %c0_4] : memref<256x1xf32, #tpu.memory_space<vmem>>, vector<256x1xf32>
    %4 = vector.broadcast %3 : vector<256x1xf32> to vector<256x128xf32>
    %5 = arith.subf %2, %4 : vector<256x128xf32>
    %c0_5 = arith.constant 0 : index
    %c0_6 = arith.constant 0 : index
    %6 = vector.load %arg5[%c0_5, %c0_6] : memref<1x128xf32, #tpu.memory_space<vmem>>, vector<1x128xf32>
    %7 = vector.broadcast %6 : vector<1x128xf32> to vector<256x128xf32>
    %8 = arith.subf %5, %7 : vector<256x128xf32>
    %9 = math.exp %8 : vector<256x128xf32>
    %c0_7 = arith.constant 0 : index
    %c0_8 = arith.constant 0 : index
    %10 = vector.load %arg6[%c0_7, %c0_8] : memref<256x128xf32, #tpu.memory_space<vmem>>, vector<256x128xf32>
    tpu.vector_store %arg6[%c0_7, %c0_8], %9 {strides = array<i32>} : memref<256x128xf32, #tpu.memory_space<vmem>>, vector<256x128xf32>,
    return
  }
  func.func @transform_0(%arg0: i32, %arg1: i32) -> (i32, i32) {
    %c0_i32 = arith.constant 0 : i32
    %c0_i32_0 = arith.constant 0 : i32
    return %arg0, %c0_i32 : i32, i32
  }
  func.func @transform_1(%arg0: i32, %arg1: i32) -> (i32, i32) {
    %c0_i32 = arith.constant 0 : i32
    %c0_i32_0 = arith.constant 0 : i32
    return %c0_i32, %arg1 : i32, i32
  }
  func.func @transform_2(%arg0: i32, %arg1: i32) -> (i32, i32) {
    %c0_i32 = arith.constant 0 : i32
    %c0_i32_0 = arith.constant 0 : i32
    return %arg0, %c0_i32 : i32, i32
  }
  func.func @transform_3(%arg0: i32, %arg1: i32) -> (i32, i32) {
    %c0_i32 = arith.constant 0 : i32
    %c0_i32_0 = arith.constant 0 : i32
    return %c0_i32, %arg1 : i32, i32
  }
  func.func @transform_4(%arg0: i32, %arg1: i32) -> (i32, i32) {
    %c0_i32 = arith.constant 0 : i32
    return %arg0, %arg1 : i32, i32
  }
}

</mosaic_0001>

<llo_original>
// kernel: tpu_custom_call.1
$region0: #{tpu_custom_call.1}
  #allocation0 [shape = 'u32[]', space=smem, size = 0x4, offset = 0x4, fixed_abs, tag = 'smem constant byte address 0x4 - core index']
  #allocation1 [shape = 'u32[144,128]{1,0:T(1,128)}', space=vmem, size = 0x12000, scoped, tag = 'internal scratch']
  %s0 = inlined_call_operand.vmem [shape: f32[256,32], index: 0, kind: input, shape index: {}]
  %s1 = inlined_call_operand.vmem [shape: f32[32,128], index: 1, kind: input, shape index: {}]
  %s2 = inlined_call_operand.vmem [shape: f32[256,1], index: 2, kind: input, shape index: {}]
  %s3 = inlined_call_operand.vmem [shape: f32[1,128], index: 3, kind: input, shape index: {}]
  %s4 = inlined_call_operand.hbm [shape: f32[256,128], index: 4, kind: output, shape index: {}]
  %s5 = sld [smem:[#allocation0]]
  $region26: #{tpu_custom_call.1} parent=0
    _
  %s7 = ssub.s32 1, %s5
  %s8 = scalar_select 0, %s7, %s5
  $region1: #{tpu_custom_call.1} parent=0
    #allocation2 [shape = 'u8[131072]{0}', space=vmem, size = 0x20000, scoped, tag = 'output window, operand 0, single buffered']
    #allocation3 [shape = 's32[1]{0}', space=sflag, size = 0x4, scoped, tag = 'scoped memory for tpu_custom_call.1']
    %9 = vsyncpa [#allocation3], 0
    // Predicated region
    $region2: #{tpu_custom_call.1} parent=1 // pred_check
      _
    $region3: #{tpu_custom_call.1} parent=1 // pred_check_branch
      %11 = sbr.rel (0) target = $region5
    $region4: #{tpu_custom_call.1} parent=1 // pred_region
      _
    $region5: #{tpu_custom_call.1} parent=1 // pred_fallthru
      _
    // Predicated region
    $region6: #{tpu_custom_call.1} parent=1 // pred_check
      _
    $region7: #{tpu_custom_call.1} parent=1 // pred_check_branch
      %13 = sbr.rel (0) target = $region9
    $region8: #{tpu_custom_call.1} parent=1 // pred_region
      _
    $region9: #{tpu_custom_call.1} parent=1 // pred_fallthru
      _
    // Predicated region
    $region10: #{tpu_custom_call.1} parent=1 // pred_check
      _
    $region11: #{tpu_custom_call.1} parent=1 // pred_check_branch
      %15 = sbr.rel (0) target = $region13
    $region12: #{tpu_custom_call.1} parent=1 // pred_region
      _
    $region13: #{tpu_custom_call.1} parent=1 // pred_fallthru
      _
    // Predicated region
    $region14: #{tpu_custom_call.1} parent=1 // pred_check
      _
    $region15: #{tpu_custom_call.1} parent=1 // pred_check_branch
      %17 = sbr.rel (0) target = $region17
    $region16: #{tpu_custom_call.1} parent=1 // pred_region
      _
    $region17: #{tpu_custom_call.1} parent=1 // pred_fallthru
      _
    %v18 = vld [vmem:[%s0] sm:$0xff]
    %v19 = vld [vmem:[%s0 + $0x8] sm:$0xff]
    %v20 = vld [vmem:[%s0 + $0x10] sm:$0xff]
    %v21 = vld [vmem:[%s0 + $0x18] sm:$0xff]
    %v22 = vld [vmem:[%s0 + $0x20] sm:$0xff]
    %v23 = vld [vmem:[%s0 + $0x28] sm:$0xff]
    %v24 = vld [vmem:[%s0 + $0x30] sm:$0xff]
    %v25 = vld [vmem:[%s0 + $0x38] sm:$0xff]
    %v26 = vld [vmem:[%s0 + $0x40] sm:$0xff]
    %v27 = vld [vmem:[%s0 + $0x48] sm:$0xff]
    %v28 = vld [vmem:[%s0 + $0x50] sm:$0xff]
    %v29 = vld [vmem:[%s0 + $0x58] sm:$0xff]
    %v30 = vld [vmem:[%s0 + $0x60] sm:$0xff]
    %v31 = vld [vmem:[%s0 + $0x68] sm:$0xff]
    %v32 = vld [vmem:[%s0 + $0x70] sm:$0xff]
    %v33 = vld [vmem:[%s0 + $0x78] sm:$0xff]
    %v34 = vld [vmem:[%s0 + $0x80] sm:$0xff]
    %v35 = vld [vmem:[%s0 + $0x88] sm:$0xff]
    %v36 = vld [vmem:[%s0 + $0x90] sm:$0xff]
    %v37 = vld [vmem:[%s0 + $0x98] sm:$0xff]
    %v38 = vld [vmem:[%s0 + $0xa0] sm:$0xff]
    %v39 = vld [vmem:[%s0 + $0xa8] sm:$0xff]
    %v40 = vld [vmem:[%s0 + $0xb0] sm:$0xff]
    %v41 = vld [vmem:[%s0 + $0xb8] sm:$0xff]
    %v42 = vld [vmem:[%s0 + $0xc0] sm:$0xff]
    %v43 = vld [vmem:[%s0 + $0xc8] sm:$0xff]
    %v44 = vld [vmem:[%s0 + $0xd0] sm:$0xff]
    %v45 = vld [vmem:[%s0 + $0xd8] sm:$0xff]
    %v46 = vld [vmem:[%s0 + $0xe0] sm:$0xff]
    %v47 = vld [vmem:[%s0 + $0xe8] sm:$0xff]
    %v48 = vld [vmem:[%s0 + $0xf0] sm:$0xff]
    %v49 = vld [vmem:[%s0 + $0xf8] sm:$0xff]
    %v50 = vld [vmem:[%s1] sm:$0xff]
    %v51 = vld [vmem:[%s1 + $0x8] sm:$0xff]
    %v52 = vld [vmem:[%s1 + $0x10] sm:$0xff]
    %v53 = vld [vmem:[%s1 + $0x18] sm:$0xff]
    %vm54 = vcmask 261120
    %v56 = vsel %vm54, %v18, 0
    %v59 = vsel %vm54, %v19, 0
    %v62 = vsel %vm54, %v20, 0
    %v65 = vsel %vm54, %v21, 0
    %v68 = vsel %vm54, %v22, 0
    %v71 = vsel %vm54, %v23, 0
    %v74 = vsel %vm54, %v24, 0
    %v77 = vsel %vm54, %v25, 0
    %v80 = vsel %vm54, %v26, 0
    %v83 = vsel %vm54, %v27, 0
    %v86 = vsel %vm54, %v28, 0
    %v89 = vsel %vm54, %v29, 0
    %v92 = vsel %vm54, %v30, 0
    %v95 = vsel %vm54, %v31, 0
    %v98 = vsel %vm54, %v32, 0
    %v101 = vsel %vm54, %v33, 0
    %v104 = vsel %vm54, %v34, 0
    %v107 = vsel %vm54, %v35, 0
    %v110 = vsel %vm54, %v36, 0
    %v113 = vsel %vm54, %v37, 0
    %v116 = vsel %vm54, %v38, 0
    %v119 = vsel %vm54, %v39, 0
    %v122 = vsel %vm54, %v40, 0
    %v125 = vsel %vm54, %v41, 0
    %v128 = vsel %vm54, %v42, 0
    %v131 = vsel %vm54, %v43, 0
    %v134 = vsel %vm54, %v44, 0
    %v137 = vsel %vm54, %v45, 0
    %v140 = vsel %vm54, %v46, 0
    %v143 = vsel %vm54, %v47, 0
    %v146 = vsel %vm54, %v48, 0
    %v149 = vsel %vm54, %v49, 0
    %151 = vmatprep.subr.mxu0 0.0
    %152 = vmatpush1.msra.mxu0 %v50
    %153 = vmatprep.subr.mxu0 0.0
    %154 = vmatpush1.msra.mxu0 %v51
    %155 = vmatprep.subr.mxu0 0.0
    %156 = vmatpush1.msra.mxu0 %v52
    %157 = vmatprep.subr.mxu0 0.0
    %158 = vmatpush1.msra.mxu0 %v53
    %159 = vmatprep.subr.mxu0 0.0
    %160 = vmatpush1.msra.mxu0 0.0
    %161 = vmatprep.subr.mxu0 0.0
    %162 = vmatpush1.msra.mxu0 0.0
    %163 = vmatprep.subr.mxu0 0.0
    %164 = vmatpush1.msra.mxu0 0.0
    %165 = vmatprep.subr.mxu0 0.0
    %166 = vmatpush1.msra.mxu0 0.0
    %167 = vmatprep.subr.mxu0 0.0
    %168 = vmatpush1.msra.mxu0 0.0
    %169 = vmatprep.subr.mxu0 0.0
    %170 = vmatpush1.msra.mxu0 0.0
    %171 = vmatprep.subr.mxu0 0.0
    %172 = vmatpush1.msra.mxu0 0.0
    %173 = vmatprep.subr.mxu0 0.0
    %174 = vmatpush1.msra.mxu0 0.0
    %175 = vmatprep.subr.mxu0 0.0
    %176 = vmatpush1.msra.mxu0 0.0
    %177 = vmatprep.subr.mxu0 0.0
    %178 = vmatpush1.msra.mxu0 0.0
    %179 = vmatprep.subr.mxu0 0.0
    %180 = vmatpush1.msra.mxu0 0.0
    %181 = vmatprep.subr.mxu0 0.0
    %182 = vmatpush1.msra.mxu0 0.0
    %183 = vmatprep.subr.mxu0 0.0
    %184 = vmatpush1.msra.mxu0 0.0
    %185 = vmatprep.subr.mxu0 0.0
    %186 = vmatpush1.msra.mxu0 0.0
    %187 = vmatprep.subr.mxu0 0.0
    %188 = vmatpush1.msra.mxu0 0.0
    %189 = vmatprep.subr.mxu0 0.0
    %190 = vmatpush1.msra.mxu0 0.0
    %191 = vmatprep.subr.mxu0 0.0
    %192 = vmatpush1.msra.mxu0 0.0
    %193 = vmatprep.subr.mxu0 0.0
    %194 = vmatpush1.msra.mxu0 0.0
    %195 = vmatprep.subr.mxu0 0.0
    %196 = vmatpush1.msra.mxu0 0.0
    %197 = vmatprep.subr.mxu0 0.0
    %198 = vmatpush1.msra.mxu0 0.0
    %199 = vmatprep.subr.mxu0 0.0
    %200 = vmatpush1.msra.mxu0 0.0
    %201 = vmatprep.subr.mxu0 0.0
    %202 = vmatpush1.msra.mxu0 0.0
    %203 = vmatprep.subr.mxu0 0.0
    %204 = vmatpush1.msra.mxu0 0.0
    %205 = vmatprep.subr.mxu0 0.0
    %206 = vmatpush1.msra.mxu0 0.0
    %207 = vmatprep.subr.mxu0 0.0
    %208 = vmatpush1.msra.mxu0 0.0
    %209 = vmatprep.subr.mxu0 0.0
    %210 = vmatpush1.msra.mxu0 0.0
    %211 = vmatprep.subr.mxu0 0.0
    %212 = vmatpush1.msra.mxu0 0.0
    %213 = vmatprep.subr.mxu0 0.0
    %214 = vmatpush1.msra.mxu0 0.0
    %215 = vmatprep.mubr.f32.mxu0 0.0
    %216 = vmatmul.mubr.f32.gmra.mrb[0].mxu0 %v56
    %v217 = vpop.f32.mrb[0].mxu0
    %v218 = vadd.f32 0.0, %v217
    %v219 = vpop.f32.mrb[0].mxu0
    %220 = vmatprep.mubr.f32.mxu0 0.0
    %221 = vmatmul.mubr.f32.gmra.mrb[0].mxu0 %v59
    %v222 = vpop.f32.mrb[0].mxu0
    %v223 = vadd.f32 0.0, %v222
    %v224 = vpop.f32.mrb[0].mxu0
    %225 = vmatprep.mubr.f32.mxu0 0.0
    %226 = vmatmul.mubr.f32.gmra.mrb[0].mxu0 %v62
    %v227 = vpop.f32.mrb[0].mxu0
    %v228 = vadd.f32 0.0, %v227
    %v229 = vpop.f32.mrb[0].mxu0
    %230 = vmatprep.mubr.f32.mxu0 0.0
    %231 = vmatmul.mubr.f32.gmra.mrb[0].mxu0 %v65
    %v232 = vpop.f32.mrb[0].mxu0
    %v233 = vadd.f32 0.0, %v232
    %v234 = vpop.f32.mrb[0].mxu0
    %235 = vmatprep.mubr.f32.mxu0 0.0
    %236 = vmatmul.mubr.f32.gmra.mrb[0].mxu0 %v68
    %v237 = vpop.f32.mrb[0].mxu0
    %v238 = vadd.f32 0.0, %v237
    %v239 = vpop.f32.mrb[0].mxu0
    %240 = vmatprep.mubr.f32.mxu0 0.0
    %241 = vmatmul.mubr.f32.gmra.mrb[0].mxu0 %v71
    %v242 = vpop.f32.mrb[0].mxu0
    %v243 = vadd.f32 0.0, %v242
    %v244 = vpop.f32.mrb[0].mxu0
    %245 = vmatprep.mubr.f32.mxu0 0.0
    %246 = vmatmul.mubr.f32.gmra.mrb[0].mxu0 %v74
    %v247 = vpop.f32.mrb[0].mxu0
    %v248 = vadd.f32 0.0, %v247
    %v249 = vpop.f32.mrb[0].mxu0
    %250 = vmatprep.mubr.f32.mxu0 0.0
    %251 = vmatmul.mubr.f32.gmra.mrb[0].mxu0 %v77
    %v252 = vpop.f32.mrb[0].mxu0
    %v253 = vadd.f32 0.0, %v252
    %v254 = vpop.f32.mrb[0].mxu0
    %255 = vmatprep.mubr.f32.mxu0 0.0
    %256 = vmatmul.mubr.f32.gmra.mrb[0].mxu0 %v80
    %v257 = vpop.f32.mrb[0].mxu0
    %v258 = vadd.f32 0.0, %v257
    %v259 = vpop.f32.mrb[0].mxu0
    %260 = vmatprep.mubr.f32.mxu0 0.0
    %261 = vmatmul.mubr.f32.gmra.mrb[0].mxu0 %v83
    %v262 = vpop.f32.mrb[0].mxu0
    %v263 = vadd.f32 0.0, %v262
    %v264 = vpop.f32.mrb[0].mxu0
    %265 = vmatprep.mubr.f32.mxu0 0.0
    %266 = vmatmul.mubr.f32.gmra.mrb[0].mxu0 %v86
    %v267 = vpop.f32.mrb[0].mxu0
    %v268 = vadd.f32 0.0, %v267
    %v269 = vpop.f32.mrb[0].mxu0
    %270 = vmatprep.mubr.f32.mxu0 0.0
    %271 = vmatmul.mubr.f32.gmra.mrb[0].mxu0 %v89
    %v272 = vpop.f32.mrb[0].mxu0
    %v273 = vadd.f32 0.0, %v272
    %v274 = vpop.f32.mrb[0].mxu0
    %275 = vmatprep.mubr.f32.mxu0 0.0
    %276 = vmatmul.mubr.f32.gmra.mrb[0].mxu0 %v92
    %v277 = vpop.f32.mrb[0].mxu0
    %v278 = vadd.f32 0.0, %v277
    %v279 = vpop.f32.mrb[0].mxu0
    %280 = vmatprep.mubr.f32.mxu0 0.0
    %281 = vmatmul.mubr.f32.gmra.mrb[0].mxu0 %v95
    %v282 = vpop.f32.mrb[0].mxu0
    %v283 = vadd.f32 0.0, %v282
    %v284 = vpop.f32.mrb[0].mxu0
    %285 = vmatprep.mubr.f32.mxu0 0.0
    %286 = vmatmul.mubr.f32.gmra.mrb[0].mxu0 %v98
    %v287 = vpop.f32.mrb[0].mxu0
    %v288 = vadd.f32 0.0, %v287
    %v289 = vpop.f32.mrb[0].mxu0
    %290 = vmatprep.mubr.f32.mxu0 0.0
    %291 = vmatmul.mubr.f32.gmra.mrb[0].mxu0 %v101
    %v292 = vpop.f32.mrb[0].mxu0
    %v293 = vadd.f32 0.0, %v292
    %v294 = vpop.f32.mrb[0].mxu0
    %295 = vmatprep.mubr.f32.mxu0 0.0
    %296 = vmatmul.mubr.f32.gmra.mrb[0].mxu0 %v104
    %v297 = vpop.f32.mrb[0].mxu0
    %v298 = vadd.f32 0.0, %v297
    %v299 = vpop.f32.mrb[0].mxu0
    %300 = vmatprep.mubr.f32.mxu0 0.0
    %301 = vmatmul.mubr.f32.gmra.mrb[0].mxu0 %v107
    %v302 = vpop.f32.mrb[0].mxu0
    %v303 = vadd.f32 0.0, %v302
    %v304 = vpop.f32.mrb[0].mxu0
    %305 = vmatprep.mubr.f32.mxu0 0.0
    %306 = vmatmul.mubr.f32.gmra.mrb[0].mxu0 %v110
    %v307 = vpop.f32.mrb[0].mxu0
    %v308 = vadd.f32 0.0, %v307
    %v309 = vpop.f32.mrb[0].mxu0
    %310 = vmatprep.mubr.f32.mxu0 0.0
    %311 = vmatmul.mubr.f32.gmra.mrb[0].mxu0 %v113
    %v312 = vpop.f32.mrb[0].mxu0
    %v313 = vadd.f32 0.0, %v312
    %v314 = vpop.f32.mrb[0].mxu0
    %315 = vmatprep.mubr.f32.mxu0 0.0
    %316 = vmatmul.mubr.f32.gmra.mrb[0].mxu0 %v116
    %v317 = vpop.f32.mrb[0].mxu0
    %v318 = vadd.f32 0.0, %v317
    %v319 = vpop.f32.mrb[0].mxu0
    %320 = vmatprep.mubr.f32.mxu0 0.0
    %321 = vmatmul.mubr.f32.gmra.mrb[0].mxu0 %v119
    %v322 = vpop.f32.mrb[0].mxu0
    %v323 = vadd.f32 0.0, %v322
    %v324 = vpop.f32.mrb[0].mxu0
    %325 = vmatprep.mubr.f32.mxu0 0.0
    %326 = vmatmul.mubr.f32.gmra.mrb[0].mxu0 %v122
    %v327 = vpop.f32.mrb[0].mxu0
    %v328 = vadd.f32 0.0, %v327
    %v329 = vpop.f32.mrb[0].mxu0
    %330 = vmatprep.mubr.f32.mxu0 0.0
    %331 = vmatmul.mubr.f32.gmra.mrb[0].mxu0 %v125
    %v332 = vpop.f32.mrb[0].mxu0
    %v333 = vadd.f32 0.0, %v332
    %v334 = vpop.f32.mrb[0].mxu0
    %335 = vmatprep.mubr.f32.mxu0 0.0
    %336 = vmatmul.mubr.f32.gmra.mrb[0].mxu0 %v128
    %v337 = vpop.f32.mrb[0].mxu0
    %v338 = vadd.f32 0.0, %v337
    %v339 = vpop.f32.mrb[0].mxu0
    %340 = vmatprep.mubr.f32.mxu0 0.0
    %341 = vmatmul.mubr.f32.gmra.mrb[0].mxu0 %v131
    %v342 = vpop.f32.mrb[0].mxu0
    %v343 = vadd.f32 0.0, %v342
    %v344 = vpop.f32.mrb[0].mxu0
    %345 = vmatprep.mubr.f32.mxu0 0.0
    %346 = vmatmul.mubr.f32.gmra.mrb[0].mxu0 %v134
    %v347 = vpop.f32.mrb[0].mxu0
    %v348 = vadd.f32 0.0, %v347
    %v349 = vpop.f32.mrb[0].mxu0
    %350 = vmatprep.mubr.f32.mxu0 0.0
    %351 = vmatmul.mubr.f32.gmra.mrb[0].mxu0 %v137
    %v352 = vpop.f32.mrb[0].mxu0
    %v353 = vadd.f32 0.0, %v352
    %v354 = vpop.f32.mrb[0].mxu0
    %355 = vmatprep.mubr.f32.mxu0 0.0
    %356 = vmatmul.mubr.f32.gmra.mrb[0].mxu0 %v140
    %v357 = vpop.f32.mrb[0].mxu0
    %v358 = vadd.f32 0.0, %v357
    %v359 = vpop.f32.mrb[0].mxu0
    %360 = vmatprep.mubr.f32.mxu0 0.0
    %361 = vmatmul.mubr.f32.gmra.mrb[0].mxu0 %v143
    %v362 = vpop.f32.mrb[0].mxu0
    %v363 = vadd.f32 0.0, %v362
    %v364 = vpop.f32.mrb[0].mxu0
    %365 = vmatprep.mubr.f32.mxu0 0.0
    %366 = vmatmul.mubr.f32.gmra.mrb[0].mxu0 %v146
    %v367 = vpop.f32.mrb[0].mxu0
    %v368 = vadd.f32 0.0, %v367
    %v369 = vpop.f32.mrb[0].mxu0
    %370 = vmatprep.mubr.f32.mxu0 0.0
    %371 = vmatmul.mubr.f32.gmra.mrb[0].mxu0 %v149
    %v372 = vpop.f32.mrb[0].mxu0
    %v373 = vadd.f32 0.0, %v372
    %v374 = vpop.f32.mrb[0].mxu0
    %375 = vdwg.mxu0
    %v376 = vld [vmem:[%s2] sm:$0xff]
    %v377 = vld [vmem:[%s2 + $0x8] sm:$0xff]
    %v378 = vld [vmem:[%s2 + $0x10] sm:$0xff]
    %v379 = vld [vmem:[%s2 + $0x18] sm:$0xff]
    %v380 = vld [vmem:[%s2 + $0x20] sm:$0xff]
    %v381 = vld [vmem:[%s2 + $0x28] sm:$0xff]
    %v382 = vld [vmem:[%s2 + $0x30] sm:$0xff]
    %v383 = vld [vmem:[%s2 + $0x38] sm:$0xff]
    %v384 = vld [vmem:[%s2 + $0x40] sm:$0xff]
    %v385 = vld [vmem:[%s2 + $0x48] sm:$0xff]
    %v386 = vld [vmem:[%s2 + $0x50] sm:$0xff]
    %v387 = vld [vmem:[%s2 + $0x58] sm:$0xff]
    %v388 = vld [vmem:[%s2 + $0x60] sm:$0xff]
    %v389 = vld [vmem:[%s2 + $0x68] sm:$0xff]
    %v390 = vld [vmem:[%s2 + $0x70] sm:$0xff]
    %v391 = vld [vmem:[%s2 + $0x78] sm:$0xff]
    %v392 = vld [vmem:[%s2 + $0x80] sm:$0xff]
    %v393 = vld [vmem:[%s2 + $0x88] sm:$0xff]
    %v394 = vld [vmem:[%s2 + $0x90] sm:$0xff]
    %v395 = vld [vmem:[%s2 + $0x98] sm:$0xff]
    %v396 = vld [vmem:[%s2 + $0xa0] sm:$0xff]
    %v397 = vld [vmem:[%s2 + $0xa8] sm:$0xff]
    %v398 = vld [vmem:[%s2 + $0xb0] sm:$0xff]
    %v399 = vld [vmem:[%s2 + $0xb8] sm:$0xff]
    %v400 = vld [vmem:[%s2 + $0xc0] sm:$0xff]
    %v401 = vld [vmem:[%s2 + $0xc8] sm:$0xff]
    %v402 = vld [vmem:[%s2 + $0xd0] sm:$0xff]
    %v403 = vld [vmem:[%s2 + $0xd8] sm:$0xff]
    %v404 = vld [vmem:[%s2 + $0xe0] sm:$0xff]
    %v405 = vld [vmem:[%s2 + $0xe8] sm:$0xff]
    %v406 = vld [vmem:[%s2 + $0xf0] sm:$0xff]
    %v407 = vld [vmem:[%s2 + $0xf8] sm:$0xff]
    %409 = vset.pattern.permute.xlu0 0
    %410 = vperm.xlu0 %409, %v376
    %v411 = vpop.permute.xlu0 %410
    %414 = vset.pattern.permute.xlu0 0
    %415 = vperm.xlu0 %414, %v377
    %v416 = vpop.permute.xlu0 %415
    %419 = vset.pattern.permute.xlu0 0
    %420 = vperm.xlu0 %419, %v378
    %v421 = vpop.permute.xlu0 %420
    %424 = vset.pattern.permute.xlu0 0
    %425 = vperm.xlu0 %424, %v379
    %v426 = vpop.permute.xlu0 %425
    %429 = vset.pattern.permute.xlu0 0
    %430 = vperm.xlu0 %429, %v380
    %v431 = vpop.permute.xlu0 %430
    %434 = vset.pattern.permute.xlu0 0
    %435 = vperm.xlu0 %434, %v381
    %v436 = vpop.permute.xlu0 %435
    %439 = vset.pattern.permute.xlu0 0
    %440 = vperm.xlu0 %439, %v382
    %v441 = vpop.permute.xlu0 %440
    %444 = vset.pattern.permute.xlu0 0
    %445 = vperm.xlu0 %444, %v383
    %v446 = vpop.permute.xlu0 %445
    %449 = vset.pattern.permute.xlu0 0
    %450 = vperm.xlu0 %449, %v384
    %v451 = vpop.permute.xlu0 %450
    %454 = vset.pattern.permute.xlu0 0
    %455 = vperm.xlu0 %454, %v385
    %v456 = vpop.permute.xlu0 %455
    %459 = vset.pattern.permute.xlu0 0
    %460 = vperm.xlu0 %459, %v386
    %v461 = vpop.permute.xlu0 %460
    %464 = vset.pattern.permute.xlu0 0
    %465 = vperm.xlu0 %464, %v387
    %v466 = vpop.permute.xlu0 %465
    %469 = vset.pattern.permute.xlu0 0
    %470 = vperm.xlu0 %469, %v388
    %v471 = vpop.permute.xlu0 %470
    %474 = vset.pattern.permute.xlu0 0
    %475 = vperm.xlu0 %474, %v389
    %v476 = vpop.permute.xlu0 %475
    %479 = vset.pattern.permute.xlu0 0
    %480 = vperm.xlu0 %479, %v390
    %v481 = vpop.permute.xlu0 %480
    %484 = vset.pattern.permute.xlu0 0
    %485 = vperm.xlu0 %484, %v391
    %v486 = vpop.permute.xlu0 %485
    %489 = vset.pattern.permute.xlu0 0
    %490 = vperm.xlu0 %489, %v392
    %v491 = vpop.permute.xlu0 %490
    %494 = vset.pattern.permute.xlu0 0
    %495 = vperm.xlu0 %494, %v393
    %v496 = vpop.permute.xlu0 %495
    %499 = vset.pattern.permute.xlu0 0
    %500 = vperm.xlu0 %499, %v394
    %v501 = vpop.permute.xlu0 %500
    %504 = vset.pattern.permute.xlu0 0
    %505 = vperm.xlu0 %504, %v395
    %v506 = vpop.permute.xlu0 %505
    %509 = vset.pattern.permute.xlu0 0
    %510 = vperm.xlu0 %509, %v396
    %v511 = vpop.permute.xlu0 %510
    %514 = vset.pattern.permute.xlu0 0
    %515 = vperm.xlu0 %514, %v397
    %v516 = vpop.permute.xlu0 %515
    %519 = vset.pattern.permute.xlu0 0
    %520 = vperm.xlu0 %519, %v398
    %v521 = vpop.permute.xlu0 %520
    %524 = vset.pattern.permute.xlu0 0
    %525 = vperm.xlu0 %524, %v399
    %v526 = vpop.permute.xlu0 %525
    %529 = vset.pattern.permute.xlu0 0
    %530 = vperm.xlu0 %529, %v400
    %v531 = vpop.permute.xlu0 %530
    %534 = vset.pattern.permute.xlu0 0
    %535 = vperm.xlu0 %534, %v401
    %v536 = vpop.permute.xlu0 %535
    %539 = vset.pattern.permute.xlu0 0
    %540 = vperm.xlu0 %539, %v402
    %v541 = vpop.permute.xlu0 %540
    %544 = vset.pattern.permute.xlu0 0
    %545 = vperm.xlu0 %544, %v403
    %v546 = vpop.permute.xlu0 %545
    %549 = vset.pattern.permute.xlu0 0
    %550 = vperm.xlu0 %549, %v404
    %v551 = vpop.permute.xlu0 %550
    %554 = vset.pattern.permute.xlu0 0
    %555 = vperm.xlu0 %554, %v405
    %v556 = vpop.permute.xlu0 %555
    %559 = vset.pattern.permute.xlu0 0
    %560 = vperm.xlu0 %559, %v406
    %v561 = vpop.permute.xlu0 %560
    %564 = vset.pattern.permute.xlu0 0
    %565 = vperm.xlu0 %564, %v407
    %v566 = vpop.permute.xlu0 %565
    %v568 = vsub.f32 %v218, %v411
    %v569 = vsub.f32 %v223, %v416
    %v570 = vsub.f32 %v228, %v421
    %v571 = vsub.f32 %v233, %v426
    %v572 = vsub.f32 %v238, %v431
    %v573 = vsub.f32 %v243, %v436
    %v574 = vsub.f32 %v248, %v441
    %v575 = vsub.f32 %v253, %v446
    %v576 = vsub.f32 %v258, %v451
    %v577 = vsub.f32 %v263, %v456
    %v578 = vsub.f32 %v268, %v461
    %v579 = vsub.f32 %v273, %v466
    %v580 = vsub.f32 %v278, %v471
    %v581 = vsub.f32 %v283, %v476
    %v582 = vsub.f32 %v288, %v481
    %v583 = vsub.f32 %v293, %v486
    %v584 = vsub.f32 %v298, %v491
    %v585 = vsub.f32 %v303, %v496
    %v586 = vsub.f32 %v308, %v501
    %v587 = vsub.f32 %v313, %v506
    %v588 = vsub.f32 %v318, %v511
    %v589 = vsub.f32 %v323, %v516
    %v590 = vsub.f32 %v328, %v521
    %v591 = vsub.f32 %v333, %v526
    %v592 = vsub.f32 %v338, %v531
    %v593 = vsub.f32 %v343, %v536
    %v594 = vsub.f32 %v348, %v541
    %v595 = vsub.f32 %v353, %v546
    %v596 = vsub.f32 %v358, %v551
    %v597 = vsub.f32 %v363, %v556
    %v598 = vsub.f32 %v368, %v561
    %v599 = vsub.f32 %v373, %v566
    %v600 = vld [vmem:[%s3] sm:$0x1]
    %v602 = vlaneseq
    %v603 = vshrl.u32 %v602, 7
    %v604 = vsub.s32 0, %v603
    %v605 = vrot.slane %v600, %v604
    %v607 = vsub.f32 %v568, %v605
    %v608 = vsub.f32 %v569, %v605
    %v609 = vsub.f32 %v570, %v605
    %v610 = vsub.f32 %v571, %v605
    %v611 = vsub.f32 %v572, %v605
    %v612 = vsub.f32 %v573, %v605
    %v613 = vsub.f32 %v574, %v605
    %v614 = vsub.f32 %v575, %v605
    %v615 = vsub.f32 %v576, %v605
    %v616 = vsub.f32 %v577, %v605
    %v617 = vsub.f32 %v578, %v605
    %v618 = vsub.f32 %v579, %v605
    %v619 = vsub.f32 %v580, %v605
    %v620 = vsub.f32 %v581, %v605
    %v621 = vsub.f32 %v582, %v605
    %v622 = vsub.f32 %v583, %v605
    %v623 = vsub.f32 %v584, %v605
    %v624 = vsub.f32 %v585, %v605
    %v625 = vsub.f32 %v586, %v605
    %v626 = vsub.f32 %v587, %v605
    %v627 = vsub.f32 %v588, %v605
    %v628 = vsub.f32 %v589, %v605
    %v629 = vsub.f32 %v590, %v605
    %v630 = vsub.f32 %v591, %v605
    %v631 = vsub.f32 %v592, %v605
    %v632 = vsub.f32 %v593, %v605
    %v633 = vsub.f32 %v594, %v605
    %v634 = vsub.f32 %v595, %v605
    %v635 = vsub.f32 %v596, %v605
    %v636 = vsub.f32 %v597, %v605
    %v637 = vsub.f32 %v598, %v605
    %v638 = vsub.f32 %v599, %v605
    %v639 = vmul.f32 %v607, 1.442695
    %v640 = vpow.pop %v639
    %v641 = vmul.f32 %v608, 1.442695
    %v642 = vpow.pop %v641
    %v643 = vmul.f32 %v609, 1.442695
    %v644 = vpow.pop %v643
    %v645 = vmul.f32 %v610, 1.442695
    %v646 = vpow.pop %v645
    %v647 = vmul.f32 %v611, 1.442695
    %v648 = vpow.pop %v647
    %v649 = vmul.f32 %v612, 1.442695
    %v650 = vpow.pop %v649
    %v651 = vmul.f32 %v613, 1.442695
    %v652 = vpow.pop %v651
    %v653 = vmul.f32 %v614, 1.442695
    %v654 = vpow.pop %v653
    %v655 = vmul.f32 %v615, 1.442695
    %v656 = vpow.pop %v655
    %v657 = vmul.f32 %v616, 1.442695
    %v658 = vpow.pop %v657
    %v659 = vmul.f32 %v617, 1.442695
    %v660 = vpow.pop %v659
    %v661 = vmul.f32 %v618, 1.442695
    %v662 = vpow.pop %v661
    %v663 = vmul.f32 %v619, 1.442695
    %v664 = vpow.pop %v663
    %v665 = vmul.f32 %v620, 1.442695
    %v666 = vpow.pop %v665
    %v667 = vmul.f32 %v621, 1.442695
    %v668 = vpow.pop %v667
    %v669 = vmul.f32 %v622, 1.442695
    %v670 = vpow.pop %v669
    %v671 = vmul.f32 %v623, 1.442695
    %v672 = vpow.pop %v671
    %v673 = vmul.f32 %v624, 1.442695
    %v674 = vpow.pop %v673
    %v675 = vmul.f32 %v625, 1.442695
    %v676 = vpow.pop %v675
    %v677 = vmul.f32 %v626, 1.442695
    %v678 = vpow.pop %v677
    %v679 = vmul.f32 %v627, 1.442695
    %v680 = vpow.pop %v679
    %v681 = vmul.f32 %v628, 1.442695
    %v682 = vpow.pop %v681
    %v683 = vmul.f32 %v629, 1.442695
    %v684 = vpow.pop %v683
    %v685 = vmul.f32 %v630, 1.442695
    %v686 = vpow.pop %v685
    %v687 = vmul.f32 %v631, 1.442695
    %v688 = vpow.pop %v687
    %v689 = vmul.f32 %v632, 1.442695
    %v690 = vpow.pop %v689
    %v691 = vmul.f32 %v633, 1.442695
    %v692 = vpow.pop %v691
    %v693 = vmul.f32 %v634, 1.442695
    %v694 = vpow.pop %v693
    %v695 = vmul.f32 %v635, 1.442695
    %v696 = vpow.pop %v695
    %v697 = vmul.f32 %v636, 1.442695
    %v698 = vpow.pop %v697
    %v699 = vmul.f32 %v637, 1.442695
    %v700 = vpow.pop %v699
    %v701 = vmul.f32 %v638, 1.442695
    %v702 = vpow.pop %v701
    %703 = vst [vmem:[#allocation2] sm:$0xff] %v640
    %704 = vst [vmem:[#allocation2 + $0x8] sm:$0xff] %v642
    %705 = vst [vmem:[#allocation2 + $0x10] sm:$0xff] %v644
    %706 = vst [vmem:[#allocation2 + $0x18] sm:$0xff] %v646
    %707 = vst [vmem:[#allocation2 + $0x20] sm:$0xff] %v648
    %708 = vst [vmem:[#allocation2 + $0x28] sm:$0xff] %v650
    %709 = vst [vmem:[#allocation2 + $0x30] sm:$0xff] %v652
    %710 = vst [vmem:[#allocation2 + $0x38] sm:$0xff] %v654
    %711 = vst [vmem:[#allocation2 + $0x40] sm:$0xff] %v656
    %712 = vst [vmem:[#allocation2 + $0x48] sm:$0xff] %v658
    %713 = vst [vmem:[#allocation2 + $0x50] sm:$0xff] %v660
    %714 = vst [vmem:[#allocation2 + $0x58] sm:$0xff] %v662
    %715 = vst [vmem:[#allocation2 + $0x60] sm:$0xff] %v664
    %716 = vst [vmem:[#allocation2 + $0x68] sm:$0xff] %v666
    %717 = vst [vmem:[#allocation2 + $0x70] sm:$0xff] %v668
    %718 = vst [vmem:[#allocation2 + $0x78] sm:$0xff] %v670
    %719 = vst [vmem:[#allocation2 + $0x80] sm:$0xff] %v672
    %720 = vst [vmem:[#allocation2 + $0x88] sm:$0xff] %v674
    %721 = vst [vmem:[#allocation2 + $0x90] sm:$0xff] %v676
    %722 = vst [vmem:[#allocation2 + $0x98] sm:$0xff] %v678
    %723 = vst [vmem:[#allocation2 + $0xa0] sm:$0xff] %v680
    %724 = vst [vmem:[#allocation2 + $0xa8] sm:$0xff] %v682
    %725 = vst [vmem:[#allocation2 + $0xb0] sm:$0xff] %v684
    %726 = vst [vmem:[#allocation2 + $0xb8] sm:$0xff] %v686
    %727 = vst [vmem:[#allocation2 + $0xc0] sm:$0xff] %v688
    %728 = vst [vmem:[#allocation2 + $0xc8] sm:$0xff] %v690
    %729 = vst [vmem:[#allocation2 + $0xd0] sm:$0xff] %v692
    %730 = vst [vmem:[#allocation2 + $0xd8] sm:$0xff] %v694
    %731 = vst [vmem:[#allocation2 + $0xe0] sm:$0xff] %v696
    %732 = vst [vmem:[#allocation2 + $0xe8] sm:$0xff] %v698
    %733 = vst [vmem:[#allocation2 + $0xf0] sm:$0xff] %v700
    %734 = vst [vmem:[#allocation2 + $0xf8] sm:$0xff] %v702
    // Predicated region
    $region18: #{tpu_custom_call.1} parent=1 // pred_check
      _
    $region19: #{tpu_custom_call.1} parent=1 // pred_check_branch
      %736 = sbr.rel (0) target = $region21
    $region20: #{tpu_custom_call.1} parent=1 // pred_region
      %s738 = ssub.s32 4096, 4096
      %739 = vsyncadd [#allocation3], %s738
      %s740 = sshll.u32 [#allocation2], 4
      %s741 = int_to_ptr.vmem [resolvable:$true] %s740
      %746 = dma.vmem_to_hbm [thread:$0]  %s741, 4096, %s4, [#allocation3], 128, 128, 8
    $region21: #{tpu_custom_call.1} parent=1 // pred_fallthru
      _
    // Predicated region
    $region22: #{tpu_custom_call.1} parent=1 // pred_check
      _
    $region23: #{tpu_custom_call.1} parent=1 // pred_check_branch
      %748 = sbr.rel (0) target = $region25
    $region24: #{tpu_custom_call.1} parent=1 // pred_region
      %749 = dma.done [#allocation3], 4096
    $region25: #{tpu_custom_call.1} parent=1 // pred_fallthru
      _
    %750 = vsyncpa [#allocation3], 1

</llo_original>
